<compile_context>
chip_gen: v6e
topology: v6e:2x2x1
jax: 0.10.0
libtpu: 0.0.40
codegen_flags: <defaults>
</compile_context>

<pallas_src>
import functools

import jax
import jax.numpy as jnp
from jax.experimental import pallas as pl
from jax.experimental.pallas import tpu as pltpu


def _poscnn_kernel(x_ref, w_ref, b_ref, o_ref, *, C):
    """Depthwise 3x3 conv + bias + residual for one block of TB images.

    x_ref: (TB, H, WC)  input images, channels folded into the lane axis
                        (lane j = w * C + c); pad lanes (if any) are zero.
    w_ref: (9, WC)      per-lane tap weights, row k = tap (ky, kx), k = 3*ky+kx;
                        residual (+1) folded into the center tap, pad lanes zero.
    b_ref: (1, WC)      per-lane bias (bias[c] replicated W times, pad lanes zero)
    o_ref: (TB, H, WC)  output block
    """
    x = x_ref[...].astype(jnp.float32)                        # (TB, H, WC)
    w = w_ref[...].astype(jnp.float32)                        # (9, WC)
    b = b_ref[...].astype(jnp.float32)                        # (1, WC)

    TB, H, WC = x.shape

    # ---- column shifts, built exactly once (horizontal zero padding exact) ----
    zcol = jnp.zeros((TB, H, C), jnp.float32)
    if WC == C:                                               # degenerate W == 1
        xl = zcol
        xr = zcol
    else:
        xl = jnp.concatenate([zcol, x[:, :, : WC - C]], axis=2)   # x[h, w-1, c]
        xr = jnp.concatenate([x[:, :, C:], zcol], axis=2)         # x[h, w+1, c]

    # ---- horizontal tap combos, one per kernel row ky (source row r) ----
    g0 = xl * w[0] + x * w[1] + xr * w[2]    # ky=0: contributes to output row r+1
    g1 = xl * w[3] + x * w[4] + xr * w[5]    # ky=1: output row r (residual in w[4])
    g2 = xl * w[6] + x * w[7] + xr * w[8]    # ky=2: contributes to output row r-1

    center = g1 + b

    # ---- vertical combine via static row slices + band stores (no zero-row copies) ----
    if H == 1:
        o_ref[...] = center.astype(o_ref.dtype)
    else:
        o_ref[:, 0:1, :] = (center[:, 0:1, :] + g2[:, 1:2, :]).astype(o_ref.dtype)
        if H > 2:
            o_ref[:, 1:H - 1, :] = (
                center[:, 1:H - 1, :] + g0[:, 0:H - 2, :] + g2[:, 2:H, :]
            ).astype(o_ref.dtype)
        o_ref[:, H - 1:H, :] = (
            center[:, H - 1:H, :] + g0[:, H - 2:H - 1, :]
        ).astype(o_ref.dtype)


def _vmem_capacity_bytes():
    try:
        return int(pltpu.get_tpu_info().vmem_capacity_bytes)
    except Exception:
        return 64 * 1024 * 1024  # conservative (v7x-sized) fallback


def poscnn_forward(x, weight, bias):
    """PosCNN.forward with s=1: depthwise 3x3 conv (+bias) + residual.

    x:      (B, N, C) tokens, N = H*H
    weight: (3, 3, C) depthwise weights; PyTorch's Conv2d weight (C, 1, 3, 3)
            maps via weight[ky, kx, c] = torch_weight[c, 0, ky, kx].
    bias:   (C,)
    returns (B, N, C)
    """
    B, N, C = x.shape
    H = int(round(N ** 0.5))
    W = H
    assert H * W == N, "N must be a perfect square"
    WC = W * C

    # Lane-folded image view (B, H, W*C): same element order as the token
    # layout, so this is a free reshape (no transpose pass).
    img = x.reshape(B, H, WC)

    # Keep the store path full-width: pad the folded lane axis to 128 lanes.
    LANE = 128
    WCk = ((WC + LANE - 1) // LANE) * LANE
    pad = WCk - WC
    if pad:
        img = jnp.pad(img, ((0, 0), (0, 0), (0, pad)))

    # ---- fold residual + lane replication into the weights / bias ----
    w = weight.astype(jnp.float32)
    w = w.at[1, 1].add(1.0)                                    # residual (+x)
    w_lane = jnp.broadcast_to(w[:, :, None, :], (3, 3, W, C)).reshape(3, 3, WC)
    b_lane = jnp.tile(bias.astype(jnp.float32), W)
    if pad:
        w_lane = jnp.pad(w_lane, ((0, 0), (0, 0), (0, pad)))
        b_lane = jnp.pad(b_lane, ((0, pad),))
    w_folded = w_lane.reshape(9, WCk)
    b_folded = b_lane.reshape(1, WCk)

    # ---- generation-aware batch tiling & VMEM sizing ----
    itemsize = jnp.dtype(x.dtype).itemsize
    img_bytes = H * WCk * itemsize          # one image block, input dtype
    img_f32 = H * WCk * 4                   # one image block, f32 temporary

    vmem_cap = _vmem_capacity_bytes()
    budget = (vmem_cap * 3) // 4            # leave headroom below physical VMEM
    target_blk = (4 << 20) if vmem_cap >= (96 << 20) else (2 << 20)

    # Per-image VMEM need: 2x double-buffered in + out blocks (input dtype)
    # plus ~7 live f32 full-block temporaries (x, xl, xr, g0, g1, g2, slack).
    per_img_need = 4 * img_bytes + 7 * img_f32
    tb = max(1, min(B, target_blk // max(img_bytes, 1)))
    tb_fit = max(1, (budget - (1 << 16)) // max(per_img_need, 1))
    tb = max(1, min(tb, tb_fit))

    grid = (pl.cdiv(B, tb),)                # ragged last block is masked by Pallas
    vmem_need = tb * per_img_need + (1 << 16)
    vmem_limit = int(min(budget, max(32 << 20, vmem_need)))

    out = pl.pallas_call(
        functools.partial(_poscnn_kernel, C=C),
        out_shape=jax.ShapeDtypeStruct((B, H, WCk), x.dtype),
        grid_spec=pltpu.PrefetchScalarGridSpec(
            num_scalar_prefetch=0,
            grid=grid,
            in_specs=[
                pl.BlockSpec((tb, H, WCk), lambda i: (i, 0, 0)),
                pl.BlockSpec((9, WCk), lambda i: (0, 0)),
                pl.BlockSpec((1, WCk), lambda i: (0, 0)),
            ],
            out_specs=pl.BlockSpec((tb, H, WCk), lambda i: (i, 0, 0)),
        ),
        compiler_params=pltpu.CompilerParams(
            dimension_semantics=("parallel",),
            vmem_limit_bytes=vmem_limit,
        ),
    )(img, w_folded, b_folded)

    if pad:
        out = out[:, :, :WC]
    return out.reshape(B, N, C)


if __name__ == "__main__":
    # Small shapes: in_chans = embed_dim = 32 (groups=embed_dim => depthwise),
    # H = W = 8 => N = 64, B = 2.
    B, H, C = 2, 8, 32
    N = H * H

    key = jax.random.PRNGKey(0)
    kx_, kw_, kb_ = jax.random.split(key, 3)
    x = jax.random.normal(kx_, (B, N, C), dtype=jnp.float32)
    # Depthwise Conv2d weight in PyTorch is (C, 1, 3, 3); stored here as (3, 3, C).
    weight = jax.random.normal(kw_, (3, 3, C), dtype=jnp.float32) * 0.1
    bias = jax.random.normal(kb_, (C,), dtype=jnp.float32) * 0.1

    out = jax.jit(poscnn_forward)(x, weight, bias)
    out = jax.block_until_ready(out)

    # Cross-check against XLA's depthwise conv (NHWC / HWIO, feature_group_count=C).
    img = x.reshape(B, H, H, C)
    w_hwio = weight.reshape(3, 3, 1, C)
    ref = jax.lax.conv_general_dilated(
        img, w_hwio, window_strides=(1, 1), padding="SAME",
        dimension_numbers=("NHWC", "HWIO", "NHWC"),
        feature_group_count=C,
    ) + bias.reshape(1, 1, 1, C) + img
    ref = ref.reshape(B, N, C)

    assert out.shape == (B, N, C)
    assert jnp.allclose(out, ref, atol=1e-4, rtol=1e-4), "mismatch vs reference"
    print("KERNEL_OK")
</pallas_src>

<mosaic_0001>
module attributes {stable_mosaic.version = 11 : i64} {
  func.func @_poscnn_kernel(%arg0: i32, %arg1: memref<2x8x256xf32, #tpu.memory_space<vmem>>, %arg2: memref<9x256xf32, #tpu.memory_space<vmem>>, %arg3: memref<1x256xf32, #tpu.memory_space<vmem>>, %arg4: memref<2x8x256xf32, #tpu.memory_space<vmem>>) attributes {dimension_semantics = [#tpu.dimension_semantics<parallel>], iteration_bounds = array<i64: 1>, scalar_prefetch = 0 : i64, scratch_operands = 0 : i64, tpu.core_type = #tpu.core_type<tc>, window_params = [{transform_indices = @transform_0, window_bounds = array<i64: 2, 8, 256>}, {pipeline_mode = #tpu.pipeline_mode<synchronous>, transform_indices = @transform_1, window_bounds = array<i64: 9, 256>}, {pipeline_mode = #tpu.pipeline_mode<synchronous>, transform_indices = @transform_2, window_bounds = array<i64: 1, 256>}, {transform_indices = @transform_3, window_bounds = array<i64: 2, 8, 256>}]} {
    %c0 = arith.constant 0 : index
    %c0_0 = arith.constant 0 : index
    %c0_1 = arith.constant 0 : index
    %0 = vector.load %arg1[%c0, %c0_0, %c0_1] : memref<2x8x256xf32, #tpu.memory_space<vmem>>, vector<2x8x256xf32>
    %c0_2 = arith.constant 0 : index
    %c0_3 = arith.constant 0 : index
    %1 = vector.load %arg2[%c0_2, %c0_3] : memref<9x256xf32, #tpu.memory_space<vmem>>, vector<9x256xf32>
    %c0_4 = arith.constant 0 : index
    %c0_5 = arith.constant 0 : index
    %2 = vector.load %arg3[%c0_4, %c0_5] : memref<1x256xf32, #tpu.memory_space<vmem>>, vector<1x256xf32>
    %cst = arith.constant 0.000000e+00 : f32
    %3 = vector.broadcast %cst : f32 to vector<2x8x32xf32>
    %4 = vector.extract_strided_slice %0 {offsets = [0, 0, 0], sizes = [2, 8, 224], strides = [1, 1, 1]} : vector<2x8x256xf32> to vector<2x8x224xf32>
    %5 = tpu.concatenate %3, %4 in 2 : vector<2x8x32xf32>, vector<2x8x224xf32> -> vector<2x8x256xf32>
    %6 = vector.extract_strided_slice %0 {offsets = [0, 0, 32], sizes = [2, 8, 224], strides = [1, 1, 1]} : vector<2x8x256xf32> to vector<2x8x224xf32>
    %7 = tpu.concatenate %6, %3 in 2 : vector<2x8x224xf32>, vector<2x8x32xf32> -> vector<2x8x256xf32>
    %8 = vector.extract_strided_slice %1 {offsets = [0, 0], sizes = [1, 256], strides = [1, 1]} : vector<9x256xf32> to vector<1x256xf32>
    %9 = vector.shape_cast %8 : vector<1x256xf32> to vector<256xf32>
    %10 = vector.shape_cast %9 : vector<256xf32> to vector<1x1x256xf32>
    %11 = vector.broadcast %10 : vector<1x1x256xf32> to vector<2x8x256xf32>
    %12 = arith.mulf %5, %11 : vector<2x8x256xf32>
    %13 = vector.extract_strided_slice %1 {offsets = [1, 0], sizes = [1, 256], strides = [1, 1]} : vector<9x256xf32> to vector<1x256xf32>
    %14 = vector.shape_cast %13 : vector<1x256xf32> to vector<256xf32>
    %15 = vector.shape_cast %14 : vector<256xf32> to vector<1x1x256xf32>
    %16 = vector.broadcast %15 : vector<1x1x256xf32> to vector<2x8x256xf32>
    %17 = arith.mulf %0, %16 : vector<2x8x256xf32>
    %18 = arith.addf %12, %17 : vector<2x8x256xf32>
    %19 = vector.extract_strided_slice %1 {offsets = [2, 0], sizes = [1, 256], strides = [1, 1]} : vector<9x256xf32> to vector<1x256xf32>
    %20 = vector.shape_cast %19 : vector<1x256xf32> to vector<256xf32>
    %21 = vector.shape_cast %20 : vector<256xf32> to vector<1x1x256xf32>
    %22 = vector.broadcast %21 : vector<1x1x256xf32> to vector<2x8x256xf32>
    %23 = arith.mulf %7, %22 : vector<2x8x256xf32>
    %24 = arith.addf %18, %23 : vector<2x8x256xf32>
    %25 = vector.extract_strided_slice %1 {offsets = [3, 0], sizes = [1, 256], strides = [1, 1]} : vector<9x256xf32> to vector<1x256xf32>
    %26 = vector.shape_cast %25 : vector<1x256xf32> to vector<256xf32>
    %27 = vector.shape_cast %26 : vector<256xf32> to vector<1x1x256xf32>
    %28 = vector.broadcast %27 : vector<1x1x256xf32> to vector<2x8x256xf32>
    %29 = arith.mulf %5, %28 : vector<2x8x256xf32>
    %30 = vector.extract_strided_slice %1 {offsets = [4, 0], sizes = [1, 256], strides = [1, 1]} : vector<9x256xf32> to vector<1x256xf32>
    %31 = vector.shape_cast %30 : vector<1x256xf32> to vector<256xf32>
    %32 = vector.shape_cast %31 : vector<256xf32> to vector<1x1x256xf32>
    %33 = vector.broadcast %32 : vector<1x1x256xf32> to vector<2x8x256xf32>
    %34 = arith.mulf %0, %33 : vector<2x8x256xf32>
    %35 = arith.addf %29, %34 : vector<2x8x256xf32>
    %36 = vector.extract_strided_slice %1 {offsets = [5, 0], sizes = [1, 256], strides = [1, 1]} : vector<9x256xf32> to vector<1x256xf32>
    %37 = vector.shape_cast %36 : vector<1x256xf32> to vector<256xf32>
    %38 = vector.shape_cast %37 : vector<256xf32> to vector<1x1x256xf32>
    %39 = vector.broadcast %38 : vector<1x1x256xf32> to vector<2x8x256xf32>
    %40 = arith.mulf %7, %39 : vector<2x8x256xf32>
    %41 = arith.addf %35, %40 : vector<2x8x256xf32>
    %42 = vector.extract_strided_slice %1 {offsets = [6, 0], sizes = [1, 256], strides = [1, 1]} : vector<9x256xf32> to vector<1x256xf32>
    %43 = vector.shape_cast %42 : vector<1x256xf32> to vector<256xf32>
    %44 = vector.shape_cast %43 : vector<256xf32> to vector<1x1x256xf32>
    %45 = vector.broadcast %44 : vector<1x1x256xf32> to vector<2x8x256xf32>
    %46 = arith.mulf %5, %45 : vector<2x8x256xf32>
    %47 = vector.extract_strided_slice %1 {offsets = [7, 0], sizes = [1, 256], strides = [1, 1]} : vector<9x256xf32> to vector<1x256xf32>
    %48 = vector.shape_cast %47 : vector<1x256xf32> to vector<256xf32>
    %49 = vector.shape_cast %48 : vector<256xf32> to vector<1x1x256xf32>
    %50 = vector.broadcast %49 : vector<1x1x256xf32> to vector<2x8x256xf32>
    %51 = arith.mulf %0, %50 : vector<2x8x256xf32>
    %52 = arith.addf %46, %51 : vector<2x8x256xf32>
    %53 = vector.extract_strided_slice %1 {offsets = [8, 0], sizes = [1, 256], strides = [1, 1]} : vector<9x256xf32> to vector<1x256xf32>
    %54 = vector.shape_cast %53 : vector<1x256xf32> to vector<256xf32>
    %55 = vector.shape_cast %54 : vector<256xf32> to vector<1x1x256xf32>
    %56 = vector.broadcast %55 : vector<1x1x256xf32> to vector<2x8x256xf32>
    %57 = arith.mulf %7, %56 : vector<2x8x256xf32>
    %58 = arith.addf %52, %57 : vector<2x8x256xf32>
    %59 = vector.shape_cast %2 : vector<1x256xf32> to vector<1x1x256xf32>
    %60 = vector.broadcast %59 : vector<1x1x256xf32> to vector<2x8x256xf32>
    %61 = arith.addf %41, %60 : vector<2x8x256xf32>
    %62 = vector.extract_strided_slice %61 {offsets = [0, 0, 0], sizes = [2, 1, 256], strides = [1, 1, 1]} : vector<2x8x256xf32> to vector<2x1x256xf32>
    %63 = vector.extract_strided_slice %58 {offsets = [0, 1, 0], sizes = [2, 1, 256], strides = [1, 1, 1]} : vector<2x8x256xf32> to vector<2x1x256xf32>
    %64 = arith.addf %62, %63 : vector<2x1x256xf32>
    %c0_6 = arith.constant 0 : index
    %c0_7 = arith.constant 0 : index
    %c0_8 = arith.constant 0 : index
    %65 = vector.load %arg4[%c0_6, %c0_7, %c0_8] : memref<2x8x256xf32, #tpu.memory_space<vmem>>, vector<2x1x256xf32>
    tpu.vector_store %arg4[%c0_6, %c0_7, %c0_8], %64 {strides = array<i32>} : memref<2x8x256xf32, #tpu.memory_space<vmem>>, vector<2x1x256xf32>,
    %66 = vector.extract_strided_slice %61 {offsets = [0, 1, 0], sizes = [2, 6, 256], strides = [1, 1, 1]} : vector<2x8x256xf32> to vector<2x6x256xf32>
    %67 = vector.extract_strided_slice %24 {offsets = [0, 0, 0], sizes = [2, 6, 256], strides = [1, 1, 1]} : vector<2x8x256xf32> to vector<2x6x256xf32>
    %68 = arith.addf %66, %67 : vector<2x6x256xf32>
    %69 = vector.extract_strided_slice %58 {offsets = [0, 2, 0], sizes = [2, 6, 256], strides = [1, 1, 1]} : vector<2x8x256xf32> to vector<2x6x256xf32>
    %70 = arith.addf %68, %69 : vector<2x6x256xf32>
    %c0_9 = arith.constant 0 : index
    %c1 = arith.constant 1 : index
    %c0_10 = arith.constant 0 : index
    %71 = vector.load %arg4[%c0_9, %c1, %c0_10] : memref<2x8x256xf32, #tpu.memory_space<vmem>>, vector<2x6x256xf32>
    tpu.vector_store %arg4[%c0_9, %c1, %c0_10], %70 {strides = array<i32>} : memref<2x8x256xf32, #tpu.memory_space<vmem>>, vector<2x6x256xf32>,
    %72 = vector.extract_strided_slice %61 {offsets = [0, 7, 0], sizes = [2, 1, 256], strides = [1, 1, 1]} : vector<2x8x256xf32> to vector<2x1x256xf32>
    %73 = vector.extract_strided_slice %24 {offsets = [0, 6, 0], sizes = [2, 1, 256], strides = [1, 1, 1]} : vector<2x8x256xf32> to vector<2x1x256xf32>
    %74 = arith.addf %72, %73 : vector<2x1x256xf32>
    %c0_11 = arith.constant 0 : index
    %c7 = arith.constant 7 : index
    %c0_12 = arith.constant 0 : index
    %75 = vector.load %arg4[%c0_11, %c7, %c0_12] : memref<2x8x256xf32, #tpu.memory_space<vmem>>, vector<2x1x256xf32>
    tpu.vector_store %arg4[%c0_11, %c7, %c0_12], %74 {strides = array<i32>} : memref<2x8x256xf32, #tpu.memory_space<vmem>>, vector<2x1x256xf32>,
    return
  }
  func.func @transform_0(%arg0: i32) -> (i32, i32, i32) {
    %c0_i32 = arith.constant 0 : i32
    %c0_i32_0 = arith.constant 0 : i32
    %c0_i32_1 = arith.constant 0 : i32
    return %arg0, %c0_i32, %c0_i32_0 : i32, i32, i32
  }
  func.func @transform_1(%arg0: i32) -> (i32, i32) {
    %c0_i32 = arith.constant 0 : i32
    %c0_i32_0 = arith.constant 0 : i32
    %c0_i32_1 = arith.constant 0 : i32
    return %c0_i32, %c0_i32_0 : i32, i32
  }
  func.func @transform_2(%arg0: i32) -> (i32, i32) {
    %c0_i32 = arith.constant 0 : i32
    %c0_i32_0 = arith.constant 0 : i32
    %c0_i32_1 = arith.constant 0 : i32
    return %c0_i32, %c0_i32_0 : i32, i32
  }
  func.func @transform_3(%arg0: i32) -> (i32, i32, i32) {
    %c0_i32 = arith.constant 0 : i32
    %c0_i32_0 = arith.constant 0 : i32
    %c0_i32_1 = arith.constant 0 : i32
    return %arg0, %c0_i32, %c0_i32_0 : i32, i32, i32
  }
}

</mosaic_0001>

<llo_original>
// kernel: tile.8
$region0: #{tile.8}
  #allocation0 [shape = 's32[1]{0}', space=sflag, size = 0x4, scoped, tag = 'scoped memory for tile.8']
  %s0 = inlined_call_operand.vmem [shape: f32[32], index: 0, kind: input, shape index: {}]
  %s1 = inlined_call_operand.vmem [shape: f32[8,32], index: 1, kind: output, shape index: {}]
  // Predicated region
  $region2: #{tile.8} parent=0 // pred_check
    _
  $region3: #{tile.8} parent=0 // pred_check_branch
    %3 = sbr.rel (0) target = $region5
  $region4: #{tile.8} parent=0 // pred_region
    _
  $region5: #{tile.8} parent=0 // pred_fallthru
    _
  %v4 = vld [vmem:[%s0] ss:$0 sm:$0xff]
  %5 = vst [vmem:[%s1] sm:$0xff] %v4

// kernel: tile.9
$region0: #{tile.9}
  %s0 = inlined_call_operand.vmem [shape: f32[8,32], index: 0, kind: input, shape index: {}]
  %s1 = inlined_call_operand.vmem [shape: f32[1,256], index: 1, kind: output, shape index: {}]
  $region1: #{tile.9} parent=0
    #allocation0 [shape = 'u8[8192]{0}', space=vmem, size = 0x2000, scoped, tag = 'scoped mem for output reshape']
    %s2 = smov 3
    %v3 = vld [vmem:[%s0] ss:$4 sm:%s2]
    %vm4 = vcmask 261120
    %5 = vst.msk [vmem:[#allocation0] ss:$8 sm:$0x3] %vm4, %v3
    %s6 = scalar_lea.vmem %s0, 3
    %s7 = smov 3
    %v8 = vld [vmem:[%s6] ss:$4 sm:%s7]
    %9 = vrot.lane.b32.xlu0 %v8, 96
    %v10 = vpop.permute.xlu0 %9
    %vm11 = vcmask 1048320
    %12 = vst.msk [vmem:[#allocation0] ss:$8 sm:$0x3] %vm11, %v10
    %s13 = scalar_lea.vmem %s0, 2
    %s14 = smov 3
    %v15 = vld [vmem:[%s13] ss:$4 sm:%s14]
    %16 = vrot.lane.b32.xlu0 %v15, 64
    %v17 = vpop.permute.xlu0 %16
    %vm18 = vcmask 785920
    %19 = vst.msk [vmem:[#allocation0] ss:$8 sm:$0x3] %vm18, %v17
    %s20 = scalar_lea.vmem %s0, 1
    %s21 = smov 3
    %v22 = vld [vmem:[%s20] ss:$4 sm:%s21]
    %23 = vrot.lane.b32.xlu0 %v22, 32
    %v24 = vpop.permute.xlu0 %23
    %vm25 = vcmask 523520
    %26 = vst.msk [vmem:[#allocation0] ss:$8 sm:$0x3] %vm25, %v24
    %s28 = sshll.u32 1, 1
    %s29 = ssub.s32 %s28, 1
    %v31 = vld [vmem:[#allocation0] sm:%s29]
    %s32 = sshll.u32 1, 1
    %s33 = ssub.s32 %s32, 1
    %34 = vst [vmem:[%s1] sm:%s33] %v31
    %s35 = scalar_lea.vmem [#allocation0], 8
    %v36 = vld [vmem:[%s35] sm:%s29]
    %s37 = sshll.u32 1, 1
    %s38 = ssub.s32 %s37, 1
    %s39 = scalar_lea.vmem %s1, 1
    %40 = vst [vmem:[%s39] sm:%s38] %v36

// kernel: poscnn_forward.1
$region0: #{poscnn_forward.1}
  #allocation0 [shape = 'u32[]', space=smem, size = 0x4, offset = 0x4, fixed_abs, tag = 'smem constant byte address 0x4 - core index']
  #allocation1 [shape = 'u32[144,128]{1,0:T(1,128)}', space=vmem, size = 0x12000, scoped, tag = 'internal scratch']
  %s0 = inlined_call_operand.vmem [shape: f32[2,8,256], index: 0, kind: input, shape index: {}]
  %s1 = inlined_call_operand.vmem [shape: f32[9,256], index: 1, kind: input, shape index: {}]
  %s2 = inlined_call_operand.vmem [shape: f32[1,256], index: 2, kind: input, shape index: {}]
  %s3 = inlined_call_operand.vmem [shape: f32[2,8,256], index: 3, kind: output, shape index: {}]
  %s4 = sld [smem:[#allocation0]]
  $region22: #{poscnn_forward.1} parent=0
    _
  %s6 = ssub.s32 1, %s4
  %s7 = scalar_select 0, %s6, %s4
  // Predicated region
  $region2: #{poscnn_forward.1} parent=0 // pred_check
    _
  $region3: #{poscnn_forward.1} parent=0 // pred_check_branch
    %9 = sbr.rel (0) target = $region5
  $region4: #{poscnn_forward.1} parent=0 // pred_region
    _
  $region5: #{poscnn_forward.1} parent=0 // pred_fallthru
    _
  // Predicated region
  $region6: #{poscnn_forward.1} parent=0 // pred_check
    _
  $region7: #{poscnn_forward.1} parent=0 // pred_check_branch
    %11 = sbr.rel (0) target = $region9
  $region8: #{poscnn_forward.1} parent=0 // pred_region
    _
  $region9: #{poscnn_forward.1} parent=0 // pred_fallthru
    _
  // Predicated region
  $region10: #{poscnn_forward.1} parent=0 // pred_check
    _
  $region11: #{poscnn_forward.1} parent=0 // pred_check_branch
    %13 = sbr.rel (0) target = $region13
  $region12: #{poscnn_forward.1} parent=0 // pred_region
    _
  $region13: #{poscnn_forward.1} parent=0 // pred_fallthru
    _
  %v14 = vld [vmem:[%s0] sm:$0xff]
  %v15 = vld [vmem:[%s0 + $0x8] sm:$0xff]
  %v16 = vld [vmem:[%s0 + $0x10] sm:$0xff]
  %v17 = vld [vmem:[%s0 + $0x18] sm:$0xff]
  %v18 = vld [vmem:[%s1] sm:$0xff]
  %v19 = vld [vmem:[%s1 + $0x8] sm:$0xff]
  %v20 = vld [vmem:[%s1 + $0x10] sm:$0x1]
  %v21 = vld [vmem:[%s1 + $0x18] sm:$0x1]
  %v22 = vld [vmem:[%s2] sm:$0x3]
  %27 = vrot.lane.b32.xlu0 %v14, 32
  %v28 = vpop.permute.xlu0 %27
  %29 = vrot.lane.b32.xlu0 %v15, 32
  %v30 = vpop.permute.xlu0 %29
  %31 = vrot.lane.b32.xlu0 %v16, 32
  %v32 = vpop.permute.xlu0 %31
  %33 = vrot.lane.b32.xlu0 %v17, 32
  %v34 = vpop.permute.xlu0 %33
  %vm35 = vcmask 261120
  %v36 = vsel %vm35, %v28, %v30
  %v37 = vsel %vm35, %v32, %v34
  %v42 = vsel %vm35, 0.0, %v28
  %v43 = vsel %vm35, 0.0, %v32
  %44 = vrot.lane.b32.xlu0 %v14, 96
  %v45 = vpop.permute.xlu0 %44
  %46 = vrot.lane.b32.xlu0 %v15, 96
  %v47 = vpop.permute.xlu0 %46
  %48 = vrot.lane.b32.xlu0 %v16, 96
  %v49 = vpop.permute.xlu0 %48
  %50 = vrot.lane.b32.xlu0 %v17, 96
  %v51 = vpop.permute.xlu0 %50
  %vm52 = vcmask 785408
  %v53 = vsel %vm52, %v45, %v47
  %v54 = vsel %vm52, %v49, %v51
  %v59 = vsel %vm52, %v47, 0.0
  %v60 = vsel %vm52, %v51, 0.0
  %v61 = vlaneseq
  %v62 = vshrl.u32 %v61, 7
  %v63 = vsub.s32 0, %v62
  %v64 = vrot.slane %v18, %v63
  %v65 = vlaneseq
  %v66 = vshrl.u32 %v65, 7
  %v67 = vsub.s32 0, %v66
  %v68 = vrot.slane %v19, %v67
  %v69 = vmul.f32 %v42, %v64
  %v70 = vmul.f32 %v36, %v68
  %v71 = vmul.f32 %v43, %v64
  %v72 = vmul.f32 %v37, %v68
  %v73 = vlaneseq
  %v74 = vshrl.u32 %v73, 7
  %v75 = vsub.s32 1, %v74
  %v76 = vrot.slane %v18, %v75
  %v77 = vlaneseq
  %v78 = vshrl.u32 %v77, 7
  %v79 = vsub.s32 1, %v78
  %v80 = vrot.slane %v19, %v79
  %v81 = vmul.f32 %v14, %v76
  %v82 = vmul.f32 %v15, %v80
  %v83 = vmul.f32 %v16, %v76
  %v84 = vmul.f32 %v17, %v80
  %v85 = vadd.f32 %v69, %v81
  %v86 = vadd.f32 %v70, %v82
  %v87 = vadd.f32 %v71, %v83
  %v88 = vadd.f32 %v72, %v84
  %v89 = vlaneseq
  %v90 = vshrl.u32 %v89, 7
  %v91 = vsub.s32 2, %v90
  %v92 = vrot.slane %v18, %v91
  %v93 = vlaneseq
  %v94 = vshrl.u32 %v93, 7
  %v95 = vsub.s32 2, %v94
  %v96 = vrot.slane %v19, %v95
  %v97 = vmul.f32 %v53, %v92
  %v98 = vmul.f32 %v59, %v96
  %v99 = vmul.f32 %v54, %v92
  %v100 = vmul.f32 %v60, %v96
  %v101 = vadd.f32 %v85, %v97
  %v102 = vadd.f32 %v86, %v98
  %v103 = vadd.f32 %v87, %v99
  %v104 = vadd.f32 %v88, %v100
  %v105 = vlaneseq
  %v106 = vshrl.u32 %v105, 7
  %v107 = vsub.s32 3, %v106
  %v108 = vrot.slane %v18, %v107
  %v109 = vlaneseq
  %v110 = vshrl.u32 %v109, 7
  %v111 = vsub.s32 3, %v110
  %v112 = vrot.slane %v19, %v111
  %v113 = vmul.f32 %v42, %v108
  %v114 = vmul.f32 %v36, %v112
  %v115 = vmul.f32 %v43, %v108
  %v116 = vmul.f32 %v37, %v112
  %v117 = vlaneseq
  %v118 = vshrl.u32 %v117, 7
  %v119 = vsub.s32 4, %v118
  %v120 = vrot.slane %v18, %v119
  %v121 = vlaneseq
  %v122 = vshrl.u32 %v121, 7
  %v123 = vsub.s32 4, %v122
  %v124 = vrot.slane %v19, %v123
  %v125 = vmul.f32 %v14, %v120
  %v126 = vmul.f32 %v15, %v124
  %v127 = vmul.f32 %v16, %v120
  %v128 = vmul.f32 %v17, %v124
  %v129 = vadd.f32 %v113, %v125
  %v130 = vadd.f32 %v114, %v126
  %v131 = vadd.f32 %v115, %v127
  %v132 = vadd.f32 %v116, %v128
  %v133 = vlaneseq
  %v134 = vshrl.u32 %v133, 7
  %v135 = vsub.s32 5, %v134
  %v136 = vrot.slane %v18, %v135
  %v137 = vlaneseq
  %v138 = vshrl.u32 %v137, 7
  %v139 = vsub.s32 5, %v138
  %v140 = vrot.slane %v19, %v139
  %v141 = vmul.f32 %v53, %v136
  %v142 = vmul.f32 %v59, %v140
  %v143 = vmul.f32 %v54, %v136
  %v144 = vmul.f32 %v60, %v140
  %v145 = vadd.f32 %v129, %v141
  %v146 = vadd.f32 %v130, %v142
  %v147 = vadd.f32 %v131, %v143
  %v148 = vadd.f32 %v132, %v144
  %v149 = vlaneseq
  %v150 = vshrl.u32 %v149, 7
  %v151 = vsub.s32 6, %v150
  %v152 = vrot.slane %v18, %v151
  %v153 = vlaneseq
  %v154 = vshrl.u32 %v153, 7
  %v155 = vsub.s32 6, %v154
  %v156 = vrot.slane %v19, %v155
  %v157 = vmul.f32 %v42, %v152
  %v158 = vmul.f32 %v36, %v156
  %v159 = vmul.f32 %v43, %v152
  %v160 = vmul.f32 %v37, %v156
  %v161 = vlaneseq
  %v162 = vshrl.u32 %v161, 7
  %v163 = vsub.s32 7, %v162
  %v164 = vrot.slane %v18, %v163
  %v165 = vlaneseq
  %v166 = vshrl.u32 %v165, 7
  %v167 = vsub.s32 7, %v166
  %v168 = vrot.slane %v19, %v167
  %v169 = vmul.f32 %v14, %v164
  %v170 = vmul.f32 %v15, %v168
  %v171 = vmul.f32 %v16, %v164
  %v172 = vmul.f32 %v17, %v168
  %v173 = vadd.f32 %v157, %v169
  %v174 = vadd.f32 %v158, %v170
  %v175 = vadd.f32 %v159, %v171
  %v176 = vadd.f32 %v160, %v172
  %v177 = vlaneseq
  %v178 = vshrl.u32 %v177, 7
  %v179 = vsub.s32 0, %v178
  %v180 = vrot.slane %v20, %v179
  %v181 = vlaneseq
  %v182 = vshrl.u32 %v181, 7
  %v183 = vsub.s32 0, %v182
  %v184 = vrot.slane %v21, %v183
  %v185 = vmul.f32 %v53, %v180
  %v186 = vmul.f32 %v59, %v184
  %v187 = vmul.f32 %v54, %v180
  %v188 = vmul.f32 %v60, %v184
  %v189 = vadd.f32 %v173, %v185
  %v190 = vadd.f32 %v174, %v186
  %v191 = vadd.f32 %v175, %v187
  %v192 = vadd.f32 %v176, %v188
  %v194 = vlaneseq
  %v195 = vshrl.u32 %v194, 7
  %v196 = vsub.s32 0, %v195
  %v197 = vrot.slane %v22, %v196
  %v198 = vlaneseq
  %v199 = vshrl.u32 %v198, 7
  %v200 = vsub.s32 1, %v199
  %v201 = vrot.slane %v22, %v200
  %v204 = vadd.f32 %v145, %v197
  %v205 = vadd.f32 %v146, %v201
  %v206 = vadd.f32 %v147, %v197
  %v207 = vadd.f32 %v148, %v201
  %v212 = vrot.slane %v189, 1
  %v213 = vrot.slane %v190, 1
  %v214 = vrot.slane %v191, 1
  %v215 = vrot.slane %v192, 1
  %v220 = vadd.f32 %v204, %v212
  %v221 = vadd.f32 %v205, %v213
  %v222 = vadd.f32 %v206, %v214
  %v223 = vadd.f32 %v207, %v215
  %v228 = vcombine.low %v220, %v221
  %v230 = vunpack.c.l.s4 1966171168
  %v231 = vunpack.c.0.s8 %v230
  %v232 = vlaneseq
  %v233 = vshrl.u32 %v232, 7
  %v234 = vsub.s32 %v231, %v233
  %v235 = vrot.slane %v228, %v234
  %v237 = vunpack.c.l.s4 1966171168
  %v238 = vunpack.c.0.s8 %v237
  %v239 = vlaneseq
  %v240 = vshrl.u32 %v239, 7
  %v241 = vsub.s32 %v238, %v240
  %v242 = vrot.slane %v235, %v241
  %v243 = vcombine.low %v222, %v223
  %v245 = vunpack.c.l.s4 1966171168
  %v246 = vunpack.c.0.s8 %v245
  %v247 = vlaneseq
  %v248 = vshrl.u32 %v247, 7
  %v249 = vsub.s32 %v246, %v248
  %v250 = vrot.slane %v243, %v249
  %v252 = vunpack.c.l.s4 1966171168
  %v253 = vunpack.c.0.s8 %v252
  %v254 = vlaneseq
  %v255 = vshrl.u32 %v254, 7
  %v256 = vsub.s32 %v253, %v255
  %v257 = vrot.slane %v250, %v256
  %v260 = vlaneseq
  %vm261 = vcmp.ge.s32.totalorder %v260, 0
  %vm262 = vcmp.lt.s32.totalorder %v260, 256
  %vm263 = vmand %vm261, %vm262
  %264 = vst.msk [vmem:[%s3] ss:$8 sm:$0x3] %vm263, %v242
  %265 = vst.msk [vmem:[%s3] ss:$8 sm:$0x0] %vm263, %v242
  %s266 = scalar_lea.vmem %s3, 16
  %267 = vst.msk [vmem:[%s266] ss:$8 sm:$0x3] %vm263, %v257
  %268 = vst.msk [vmem:[%s266] ss:$8 sm:$0x0] %vm263, %v257
  %v273 = vrot.slane %v101, 7
  %v274 = vrot.slane %v102, 7
  %v275 = vrot.slane %v103, 7
  %v276 = vrot.slane %v104, 7
  %v281 = vadd.f32 %v204, %v273
  %v282 = vadd.f32 %v205, %v274
  %v283 = vadd.f32 %v206, %v275
  %v284 = vadd.f32 %v207, %v276
  %v285 = vadd.f32 %v281, %v212
  %v286 = vadd.f32 %v282, %v213
  %v287 = vadd.f32 %v283, %v214
  %v288 = vadd.f32 %v284, %v215
  %289 = vst [vmem:[%s3] sm:$0x7e] %v285
  %290 = vst [vmem:[%s3 + $0x8] sm:$0x7e] %v286
  %291 = vst [vmem:[%s3 + $0x10] sm:$0x7e] %v287
  %292 = vst [vmem:[%s3 + $0x18] sm:$0x7e] %v288
  %v297 = vcombine.high %v281, %v282
  %v299 = vunpack.c.l.s4 1966171168
  %v300 = vunpack.c.0.s8 %v299
  %v301 = vlaneseq
  %v302 = vshrl.u32 %v301, 7
  %v303 = vsub.s32 %v300, %v302
  %v304 = vrot.slane %v297, %v303
  %v305 = vcombine.high %v304, %v304
  %v307 = vunpack.c.l.s4 1966171168
  %v308 = vunpack.c.0.s8 %v307
  %v309 = vlaneseq
  %v310 = vshrl.u32 %v309, 7
  %v311 = vsub.s32 %v308, %v310
  %v312 = vrot.slane %v305, %v311
  %v313 = vcombine.high %v312, %v312
  %v314 = vcombine.high %v283, %v284
  %v316 = vunpack.c.l.s4 1966171168
  %v317 = vunpack.c.0.s8 %v316
  %v318 = vlaneseq
  %v319 = vshrl.u32 %v318, 7
  %v320 = vsub.s32 %v317, %v319
  %v321 = vrot.slane %v314, %v320
  %v322 = vcombine.high %v321, %v321
  %v324 = vunpack.c.l.s4 1966171168
  %v325 = vunpack.c.0.s8 %v324
  %v326 = vlaneseq
  %v327 = vshrl.u32 %v326, 7
  %v328 = vsub.s32 %v325, %v327
  %v329 = vrot.slane %v322, %v328
  %v330 = vcombine.high %v329, %v329
  %s333 = scalar_lea.vmem %s3, 7
  %334 = vst.msk [vmem:[%s333] ss:$8 sm:$0x3] %vm263, %v313
  %335 = vst.msk [vmem:[%s333] ss:$8 sm:$0x0] %vm263, %v313
  %s336 = scalar_lea.vmem %s3, 23
  %337 = vst.msk [vmem:[%s336] ss:$8 sm:$0x3] %vm263, %v330
  %338 = vst.msk [vmem:[%s336] ss:$8 sm:$0x0] %vm263, %v330
  // Predicated region
  $region14: #{poscnn_forward.1} parent=0 // pred_check
    _
  $region15: #{poscnn_forward.1} parent=0 // pred_check_branch
    %340 = sbr.rel (0) target = $region17
  $region16: #{poscnn_forward.1} parent=0 // pred_region
    _
  $region17: #{poscnn_forward.1} parent=0 // pred_fallthru
    _
  // Predicated region
  $region18: #{poscnn_forward.1} parent=0 // pred_check
    _
  $region19: #{poscnn_forward.1} parent=0 // pred_check_branch
    %342 = sbr.rel (0) target = $region21
  $region20: #{poscnn_forward.1} parent=0 // pred_region
    _
  $region21: #{poscnn_forward.1} parent=0 // pred_fallthru
    _

</llo_original>
